<compile_context>
chip_gen: v7x
topology: tpu7x:2x2x1
jax: 0.10.0
libtpu: 0.0.40
codegen_flags: <defaults>
</compile_context>

<pallas_src>
import functools
import math

import jax
import jax.numpy as jnp
from jax import lax
from jax.experimental import pallas as pl
from jax.experimental.pallas import tpu as pltpu

LANES = 128


def conv2d_kernel(x_ref, w_ref, b_ref, o_ref, patches_ref, *, K):
    """Computes one (TH, Wo, Cout_p) output tile of a stride-1 'same' conv.

    x_ref:       (TH+K-1, Wp, Cin)   f32 halo input band (VMEM, pipelined)
    w_ref:       (K*K*Cin, Cout_p)   bf16 folded weights (resident in VMEM)
    b_ref:       (1, Cout_p)         f32 bias
    o_ref:       (TH, Wo, Cout_p)    f32 output tile (lane-dense Cout)
    patches_ref: (TH, Wo, K*K*Cin)   f32 VMEM scratch for the im2col tile
    """
    TH, Wo, Cout_p = o_ref.shape
    Cin = x_ref.shape[-1]

    # im2col once per tile: K*K static-offset copies into scratch, so the MXU
    # sees a single matmul with contraction K*K*Cin instead of K*K skinny
    # matmuls with contraction Cin (and only one push/drain).
    for kh in range(K):
        for kw in range(K):
            c0 = (kh * K + kw) * Cin
            patches_ref[:, :, c0:c0 + Cin] = x_ref[kh:kh + TH, kw:kw + Wo, :]

    patches = patches_ref[...].reshape(TH * Wo, K * K * Cin).astype(jnp.bfloat16)
    acc = jnp.dot(patches, w_ref[...], preferred_element_type=jnp.float32)
    acc = acc + b_ref[...]                       # (1, Cout_p) f32 broadcast
    o_ref[...] = acc.reshape(TH, Wo, Cout_p).astype(o_ref.dtype)


def my_conv2d(x_nchw, weight_oihw, bias, padding=None, tile_h=8):
    """Equivalent of F.conv2d(x, weight, bias, padding=kernel_size//2), stride 1."""
    N, Cin, H, W = x_nchw.shape
    Cout, Cin_w, K, K2 = weight_oihw.shape
    assert Cin == Cin_w and K == K2
    if padding is None:
        padding = K // 2

    Ho = H + 2 * padding - K + 1
    Wo = W + 2 * padding - K + 1
    Wp = W + 2 * padding

    TH = max(1, min(tile_h, Ho))          # rows of output per grid step
    nH = -(-Ho // TH)
    Ho_p = nH * TH                        # grid-padded output height
    THH = TH + K - 1                      # halo band height
    Cout_p = -(-Cout // LANES) * LANES    # lane-dense output channels
    KKC = K * K * Cin

    # ---- wrapper-side layout glue (plain XLA) -------------------------------
    # TODO(synk): keep activations NHWC end-to-end in the surrounding model so
    # these transposes / the halo-band copy are not extra HBM passes per layer.
    x_nhwc = jnp.transpose(x_nchw, (0, 2, 3, 1))
    x_pad = jnp.pad(
        x_nhwc,
        ((0, 0), (padding, padding + Ho_p - Ho), (padding, padding), (0, 0)))
    # Overlapping halo bands: duplicates (K-1)/TH of the rows once in HBM, but
    # keeps every grid block a plain Blocked DMA (auto double-buffering) and
    # both grid axes safely "parallel".
    x_bands = jnp.stack(
        [x_pad[:, h * TH:h * TH + THH, :, :] for h in range(nH)], axis=1)

    # Weights folded to (K*K*Cin, Cout_p) bf16; bias padded to lane width.
    w_flat = jnp.transpose(weight_oihw, (2, 3, 1, 0)).reshape(KKC, Cout)
    w_flat = jnp.zeros((KKC, Cout_p), jnp.bfloat16).at[:, :Cout].set(
        w_flat.astype(jnp.bfloat16))
    b_flat = jnp.zeros((1, Cout_p), jnp.float32).at[:, :Cout].set(
        bias.astype(jnp.float32))

    flops = 2 * N * Ho_p * Wo * KKC * Cout_p
    bytes_accessed = int(x_bands.size * 4 + w_flat.size * 2
                         + N * Ho_p * Wo * Cout_p * 4)

    out = pl.pallas_call(
        functools.partial(conv2d_kernel, K=K),
        out_shape=jax.ShapeDtypeStruct((N, Ho_p, Wo, Cout_p), x_nchw.dtype),
        grid=(N, nH),
        in_specs=[
            pl.BlockSpec((None, None, THH, Wp, Cin),
                         lambda n, h: (n, h, 0, 0, 0)),
            pl.BlockSpec((KKC, Cout_p), lambda n, h: (0, 0)),
            pl.BlockSpec((1, Cout_p), lambda n, h: (0, 0)),
        ],
        out_specs=pl.BlockSpec((None, TH, Wo, Cout_p),
                               lambda n, h: (n, h, 0, 0)),
        scratch_shapes=[pltpu.VMEM((TH, Wo, KKC), jnp.float32)],
        compiler_params=pltpu.CompilerParams(
            dimension_semantics=("parallel", "parallel"),
            vmem_limit_bytes=48 * 1024 * 1024),
        cost_estimate=pl.CostEstimate(
            flops=flops, transcendentals=0, bytes_accessed=bytes_accessed),
    )(x_bands, w_flat, b_flat)

    out = out[:, :Ho, :, :Cout]
    return jnp.transpose(out, (0, 3, 1, 2))


def init_myconv2d_params(key, in_channels, out_channels, kernel_size):
    """Matches MyConv2d.reset_parameters: uniform(-stdv, stdv), stdv = 1/sqrt(n)."""
    n = in_channels * kernel_size * kernel_size
    stdv = 1.0 / math.sqrt(n)
    kw_key, kb_key = jax.random.split(key)
    weight = jax.random.uniform(
        kw_key, (out_channels, in_channels, kernel_size, kernel_size),
        dtype=jnp.float32, minval=-stdv, maxval=stdv)
    bias = jax.random.uniform(
        kb_key, (out_channels,), dtype=jnp.float32, minval=-stdv, maxval=stdv)
    return weight, bias


if __name__ == "__main__":
    key = jax.random.PRNGKey(0)
    k_x, k_p = jax.random.split(key)

    batch, in_ch, out_ch, hw, ksize = 2, 4, 8, 16, 3
    x = jax.random.normal(k_x, (batch, in_ch, hw, hw), dtype=jnp.float32)
    weight, bias = init_myconv2d_params(k_p, in_ch, out_ch, ksize)

    out = my_conv2d(x, weight, bias)          # padding defaults to ksize // 2
    out = jax.block_until_ready(out)
    assert out.shape == (batch, out_ch, hw, hw)

    # Reference: same conv with operands rounded to bf16 (the kernel feeds the
    # MXU bf16 operands with f32 accumulation), so a tight tolerance applies.
    x_r = x.astype(jnp.bfloat16).astype(jnp.float32)
    w_r = weight.astype(jnp.bfloat16).astype(jnp.float32)
    ref = lax.conv_general_dilated(
        x_r, w_r, window_strides=(1, 1),
        padding=[(ksize // 2, ksize // 2)] * 2,
        dimension_numbers=("NCHW", "OIHW", "NCHW"),
    ) + bias.reshape(1, out_ch, 1, 1)
    assert jnp.allclose(out, ref, atol=1e-4, rtol=1e-4), (
        float(jnp.max(jnp.abs(out - ref))))

    print("KERNEL_OK")
</pallas_src>

<mosaic_0001>
module attributes {stable_mosaic.version = 11 : i64} {
  func.func @conv2d_kernel(%arg0: i32, %arg1: i32, %arg2: memref<1x1x10x18x4xf32, #tpu.memory_space<vmem>>, %arg3: memref<36x128xbf16, #tpu.memory_space<vmem>>, %arg4: memref<1x128xf32, #tpu.memory_space<vmem>>, %arg5: memref<1x8x16x128xf32, #tpu.memory_space<vmem>>, %arg6: memref<8x16x36xf32, #tpu.memory_space<vmem>>) attributes {dimension_semantics = [#tpu.dimension_semantics<parallel>, #tpu.dimension_semantics<parallel>], iteration_bounds = array<i64: 2, 2>, scalar_prefetch = 0 : i64, scratch_operands = 1 : i64, tpu.core_type = #tpu.core_type<tc>, window_params = [{transform_indices = @transform_0, window_bounds = array<i64: 1, 1, 10, 18, 4>}, {pipeline_mode = #tpu.pipeline_mode<synchronous>, transform_indices = @transform_1, window_bounds = array<i64: 36, 128>}, {pipeline_mode = #tpu.pipeline_mode<synchronous>, transform_indices = @transform_2, window_bounds = array<i64: 1, 128>}, {transform_indices = @transform_3, window_bounds = array<i64: 1, 8, 16, 128>}]} {
    %c0 = arith.constant 0 : index
    %c0_0 = arith.constant 0 : index
    %c0_1 = arith.constant 0 : index
    %c0_2 = arith.constant 0 : index
    %c0_3 = arith.constant 0 : index
    %0 = vector.load %arg2[%c0, %c0_0, %c0_1, %c0_2, %c0_3] : memref<1x1x10x18x4xf32, #tpu.memory_space<vmem>>, vector<1x1x8x16x4xf32>
    %1 = vector.shape_cast %0 : vector<1x1x8x16x4xf32> to vector<8x16x4xf32>
    %c0_4 = arith.constant 0 : index
    %c0_5 = arith.constant 0 : index
    %c0_6 = arith.constant 0 : index
    %2 = vector.load %arg6[%c0_4, %c0_5, %c0_6] : memref<8x16x36xf32, #tpu.memory_space<vmem>>, vector<8x16x4xf32>
    tpu.vector_store %arg6[%c0_4, %c0_5, %c0_6], %1 {strides = array<i32>} : memref<8x16x36xf32, #tpu.memory_space<vmem>>, vector<8x16x4xf32>,
    %c0_7 = arith.constant 0 : index
    %c0_8 = arith.constant 0 : index
    %c0_9 = arith.constant 0 : index
    %c1 = arith.constant 1 : index
    %c0_10 = arith.constant 0 : index
    %3 = vector.load %arg2[%c0_7, %c0_8, %c0_9, %c1, %c0_10] : memref<1x1x10x18x4xf32, #tpu.memory_space<vmem>>, vector<1x1x8x16x4xf32>
    %4 = vector.shape_cast %3 : vector<1x1x8x16x4xf32> to vector<8x16x4xf32>
    %c0_11 = arith.constant 0 : index
    %c0_12 = arith.constant 0 : index
    %c4 = arith.constant 4 : index
    %5 = vector.load %arg6[%c0_11, %c0_12, %c4] : memref<8x16x36xf32, #tpu.memory_space<vmem>>, vector<8x16x4xf32>
    tpu.vector_store %arg6[%c0_11, %c0_12, %c4], %4 {strides = array<i32>} : memref<8x16x36xf32, #tpu.memory_space<vmem>>, vector<8x16x4xf32>,
    %c0_13 = arith.constant 0 : index
    %c0_14 = arith.constant 0 : index
    %c0_15 = arith.constant 0 : index
    %c2 = arith.constant 2 : index
    %c0_16 = arith.constant 0 : index
    %6 = vector.load %arg2[%c0_13, %c0_14, %c0_15, %c2, %c0_16] : memref<1x1x10x18x4xf32, #tpu.memory_space<vmem>>, vector<1x1x8x16x4xf32>
    %7 = vector.shape_cast %6 : vector<1x1x8x16x4xf32> to vector<8x16x4xf32>
    %c0_17 = arith.constant 0 : index
    %c0_18 = arith.constant 0 : index
    %c8 = arith.constant 8 : index
    %8 = vector.load %arg6[%c0_17, %c0_18, %c8] : memref<8x16x36xf32, #tpu.memory_space<vmem>>, vector<8x16x4xf32>
    tpu.vector_store %arg6[%c0_17, %c0_18, %c8], %7 {strides = array<i32>} : memref<8x16x36xf32, #tpu.memory_space<vmem>>, vector<8x16x4xf32>,
    %c0_19 = arith.constant 0 : index
    %c0_20 = arith.constant 0 : index
    %c1_21 = arith.constant 1 : index
    %c0_22 = arith.constant 0 : index
    %c0_23 = arith.constant 0 : index
    %9 = vector.load %arg2[%c0_19, %c0_20, %c1_21, %c0_22, %c0_23] : memref<1x1x10x18x4xf32, #tpu.memory_space<vmem>>, vector<1x1x8x16x4xf32>
    %10 = vector.shape_cast %9 : vector<1x1x8x16x4xf32> to vector<8x16x4xf32>
    %c0_24 = arith.constant 0 : index
    %c0_25 = arith.constant 0 : index
    %c12 = arith.constant 12 : index
    %11 = vector.load %arg6[%c0_24, %c0_25, %c12] : memref<8x16x36xf32, #tpu.memory_space<vmem>>, vector<8x16x4xf32>
    tpu.vector_store %arg6[%c0_24, %c0_25, %c12], %10 {strides = array<i32>} : memref<8x16x36xf32, #tpu.memory_space<vmem>>, vector<8x16x4xf32>,
    %c0_26 = arith.constant 0 : index
    %c0_27 = arith.constant 0 : index
    %c1_28 = arith.constant 1 : index
    %c1_29 = arith.constant 1 : index
    %c0_30 = arith.constant 0 : index
    %12 = vector.load %arg2[%c0_26, %c0_27, %c1_28, %c1_29, %c0_30] : memref<1x1x10x18x4xf32, #tpu.memory_space<vmem>>, vector<1x1x8x16x4xf32>
    %13 = vector.shape_cast %12 : vector<1x1x8x16x4xf32> to vector<8x16x4xf32>
    %c0_31 = arith.constant 0 : index
    %c0_32 = arith.constant 0 : index
    %c16 = arith.constant 16 : index
    %14 = vector.load %arg6[%c0_31, %c0_32, %c16] : memref<8x16x36xf32, #tpu.memory_space<vmem>>, vector<8x16x4xf32>
    tpu.vector_store %arg6[%c0_31, %c0_32, %c16], %13 {strides = array<i32>} : memref<8x16x36xf32, #tpu.memory_space<vmem>>, vector<8x16x4xf32>,
    %c0_33 = arith.constant 0 : index
    %c0_34 = arith.constant 0 : index
    %c1_35 = arith.constant 1 : index
    %c2_36 = arith.constant 2 : index
    %c0_37 = arith.constant 0 : index
    %15 = vector.load %arg2[%c0_33, %c0_34, %c1_35, %c2_36, %c0_37] : memref<1x1x10x18x4xf32, #tpu.memory_space<vmem>>, vector<1x1x8x16x4xf32>
    %16 = vector.shape_cast %15 : vector<1x1x8x16x4xf32> to vector<8x16x4xf32>
    %c0_38 = arith.constant 0 : index
    %c0_39 = arith.constant 0 : index
    %c20 = arith.constant 20 : index
    %17 = vector.load %arg6[%c0_38, %c0_39, %c20] : memref<8x16x36xf32, #tpu.memory_space<vmem>>, vector<8x16x4xf32>
    tpu.vector_store %arg6[%c0_38, %c0_39, %c20], %16 {strides = array<i32>} : memref<8x16x36xf32, #tpu.memory_space<vmem>>, vector<8x16x4xf32>,
    %c0_40 = arith.constant 0 : index
    %c0_41 = arith.constant 0 : index
    %c2_42 = arith.constant 2 : index
    %c0_43 = arith.constant 0 : index
    %c0_44 = arith.constant 0 : index
    %18 = vector.load %arg2[%c0_40, %c0_41, %c2_42, %c0_43, %c0_44] : memref<1x1x10x18x4xf32, #tpu.memory_space<vmem>>, vector<1x1x8x16x4xf32>
    %19 = vector.shape_cast %18 : vector<1x1x8x16x4xf32> to vector<8x16x4xf32>
    %c0_45 = arith.constant 0 : index
    %c0_46 = arith.constant 0 : index
    %c24 = arith.constant 24 : index
    %20 = vector.load %arg6[%c0_45, %c0_46, %c24] : memref<8x16x36xf32, #tpu.memory_space<vmem>>, vector<8x16x4xf32>
    tpu.vector_store %arg6[%c0_45, %c0_46, %c24], %19 {strides = array<i32>} : memref<8x16x36xf32, #tpu.memory_space<vmem>>, vector<8x16x4xf32>,
    %c0_47 = arith.constant 0 : index
    %c0_48 = arith.constant 0 : index
    %c2_49 = arith.constant 2 : index
    %c1_50 = arith.constant 1 : index
    %c0_51 = arith.constant 0 : index
    %21 = vector.load %arg2[%c0_47, %c0_48, %c2_49, %c1_50, %c0_51] : memref<1x1x10x18x4xf32, #tpu.memory_space<vmem>>, vector<1x1x8x16x4xf32>
    %22 = vector.shape_cast %21 : vector<1x1x8x16x4xf32> to vector<8x16x4xf32>
    %c0_52 = arith.constant 0 : index
    %c0_53 = arith.constant 0 : index
    %c28 = arith.constant 28 : index
    %23 = vector.load %arg6[%c0_52, %c0_53, %c28] : memref<8x16x36xf32, #tpu.memory_space<vmem>>, vector<8x16x4xf32>
    tpu.vector_store %arg6[%c0_52, %c0_53, %c28], %22 {strides = array<i32>} : memref<8x16x36xf32, #tpu.memory_space<vmem>>, vector<8x16x4xf32>,
    %c0_54 = arith.constant 0 : index
    %c0_55 = arith.constant 0 : index
    %c2_56 = arith.constant 2 : index
    %c2_57 = arith.constant 2 : index
    %c0_58 = arith.constant 0 : index
    %24 = vector.load %arg2[%c0_54, %c0_55, %c2_56, %c2_57, %c0_58] : memref<1x1x10x18x4xf32, #tpu.memory_space<vmem>>, vector<1x1x8x16x4xf32>
    %25 = vector.shape_cast %24 : vector<1x1x8x16x4xf32> to vector<8x16x4xf32>
    %c0_59 = arith.constant 0 : index
    %c0_60 = arith.constant 0 : index
    %c32 = arith.constant 32 : index
    %26 = vector.load %arg6[%c0_59, %c0_60, %c32] : memref<8x16x36xf32, #tpu.memory_space<vmem>>, vector<8x16x4xf32>
    tpu.vector_store %arg6[%c0_59, %c0_60, %c32], %25 {strides = array<i32>} : memref<8x16x36xf32, #tpu.memory_space<vmem>>, vector<8x16x4xf32>,
    %c0_61 = arith.constant 0 : index
    %c0_62 = arith.constant 0 : index
    %c0_63 = arith.constant 0 : index
    %27 = vector.load %arg6[%c0_61, %c0_62, %c0_63] : memref<8x16x36xf32, #tpu.memory_space<vmem>>, vector<8x16x36xf32>
    %28 = vector.shape_cast %27 : vector<8x16x36xf32> to vector<128x36xf32>
    %29 = arith.truncf %28 : vector<128x36xf32> to vector<128x36xbf16>
    %c0_64 = arith.constant 0 : index
    %c0_65 = arith.constant 0 : index
    %30 = vector.load %arg3[%c0_64, %c0_65] : memref<36x128xbf16, #tpu.memory_space<vmem>>, vector<36x128xbf16>
    %cst = arith.constant dense<0.000000e+00> : vector<128x128xf32>
    %31 = tpu.matmul %29, %30, %cst {dimension_numbers = #tpu.dot_dimension_numbers<[1], [0], [0], [1], [0, 0, 1, 1], [], []>} : vector<128x36xbf16>, vector<36x128xbf16>, vector<128x128xf32> -> vector<128x128xf32>
    %c0_66 = arith.constant 0 : index
    %c0_67 = arith.constant 0 : index
    %32 = vector.load %arg4[%c0_66, %c0_67] : memref<1x128xf32, #tpu.memory_space<vmem>>, vector<1x128xf32>
    %33 = vector.broadcast %32 : vector<1x128xf32> to vector<128x128xf32>
    %34 = arith.addf %31, %33 : vector<128x128xf32>
    %35 = vector.shape_cast %34 : vector<128x128xf32> to vector<8x16x128xf32>
    %c0_68 = arith.constant 0 : index
    %c0_69 = arith.constant 0 : index
    %c0_70 = arith.constant 0 : index
    %c0_71 = arith.constant 0 : index
    %36 = vector.load %arg5[%c0_68, %c0_69, %c0_70, %c0_71] : memref<1x8x16x128xf32, #tpu.memory_space<vmem>>, vector<1x8x16x128xf32>
    %37 = vector.shape_cast %36 : vector<1x8x16x128xf32> to vector<8x16x128xf32>
    %38 = vector.shape_cast %35 : vector<8x16x128xf32> to vector<1x8x16x128xf32>
    tpu.vector_store %arg5[%c0_68, %c0_69, %c0_70, %c0_71], %38 {strides = array<i32>} : memref<1x8x16x128xf32, #tpu.memory_space<vmem>>, vector<1x8x16x128xf32>,
    return
  }
  func.func @transform_0(%arg0: i32, %arg1: i32) -> (i32, i32, i32, i32, i32) {
    %c0_i32 = arith.constant 0 : i32
    %c0_i32_0 = arith.constant 0 : i32
    %c0_i32_1 = arith.constant 0 : i32
    %c0_i32_2 = arith.constant 0 : i32
    return %arg0, %arg1, %c0_i32, %c0_i32_0, %c0_i32_1 : i32, i32, i32, i32, i32
  }
  func.func @transform_1(%arg0: i32, %arg1: i32) -> (i32, i32) {
    %c0_i32 = arith.constant 0 : i32
    %c0_i32_0 = arith.constant 0 : i32
    %c0_i32_1 = arith.constant 0 : i32
    return %c0_i32, %c0_i32_0 : i32, i32
  }
  func.func @transform_2(%arg0: i32, %arg1: i32) -> (i32, i32) {
    %c0_i32 = arith.constant 0 : i32
    %c0_i32_0 = arith.constant 0 : i32
    %c0_i32_1 = arith.constant 0 : i32
    return %c0_i32, %c0_i32_0 : i32, i32
  }
  func.func @transform_3(%arg0: i32, %arg1: i32) -> (i32, i32, i32, i32) {
    %c0_i32 = arith.constant 0 : i32
    %c0_i32_0 = arith.constant 0 : i32
    %c0_i32_1 = arith.constant 0 : i32
    return %arg0, %arg1, %c0_i32, %c0_i32_0 : i32, i32, i32, i32
  }
}

</mosaic_0001>

<llo_original>
// kernel: tpu_custom_call.1
$region0: #{tpu_custom_call.1}
  #allocation0 [shape = 'u32[]', space=smem, size = 0x4, offset = 0x4, fixed_abs, tag = 'smem constant byte address 0x4 - core index']
  #allocation1 [shape = 'u32[144,128]{1,0:T(1,128)}', space=vmem, size = 0x12000, scoped, tag = 'internal scratch']
  #allocation2 [shape = 'f32[8,16,36]{2,1,0:T(8,128)}', space=vmem, size = 0x10000, scoped, tag = 'scratch operand']
  %s0 = inlined_call_operand.vmem [shape: f32[2,2,10,18,4], index: 0, kind: input, shape index: {}]
  %s1 = inlined_call_operand.vmem [shape: bf16[36,128], index: 1, kind: input, shape index: {}]
  %s2 = inlined_call_operand.vmem [shape: f32[1,128], index: 2, kind: input, shape index: {}]
  %s3 = inlined_call_operand.hbm [shape: f32[2,16,16,128], index: 3, kind: output, shape index: {}]
  %s4 = sld [smem:[#allocation0]]
  $region45: #{tpu_custom_call.1} parent=0
    _
  %s6 = ssub.s32 1, %s4
  %s7 = scalar_select 0, %s6, %s4
  $region1: #{tpu_custom_call.1} parent=0
    #allocation3 [shape = 'u8[131072]{0}', space=vmem, size = 0x20000, scoped, tag = 'output window, operand 0']
    #allocation4 [shape = 's32[2]{0}', space=sflag, size = 0x8, scoped, tag = 'scoped memory for tpu_custom_call.1']
    %8 = vsyncpa [#allocation4], 0
    %s9 = scalar_lea.sflag [#allocation4], 1
    %10 = vsyncpa %s9, 0
    loop: start=0, step=1, limit=6
    $region2: #{tpu_custom_call.1} parent=1 // loop_pre_header
      _
    $region3: #{tpu_custom_call.1} parent=1 // loop_header
      %s12 = sphi 0, %s16
      %p13 = scmp.ge.s32.totalorder %s12, 6
      %s19 = sphi 0, %s31
      %s20 = sphi 0, %s27
      %s21 = sphi 0, %s19
      %s22 = sphi 0, %s20
      %s23 = sphi 0, %s21
      %s24 = sphi 0, %s22
      %s36 = sphi 0, %s38
      %s39 = sphi 0, %s36
      %s40 = sphi 0, %s39
      %s56 = sphi 0, %s40
      %s60 = sphi 0, %s60
      %s62 = sphi 0, %s60
      %s63 = sphi 0, %s62
      %s77 = sphi 0, %s63
      %s81 = sphi 0, %s81
      %s83 = sphi 0, %s81
      %s84 = sphi 0, %s83
      %s98 = sphi 0, %s84
      %s106 = sphi 0, %s108
      %s109 = sphi 0, %s106
      %s110 = sphi 0, %s109
      %s126 = sphi 0, %s110
    $region4: #{tpu_custom_call.1} parent=1 // loop_header_branch
      %15 = sbr.rel (%p13) target = $region8
    $region5: #{tpu_custom_call.1} parent=1 // loop_body
      %s17 = ssub.s32 %s12, 1
      %s18 = ssub.s32 %s12, 2
      %s25 = sadd.s32 1, %s20
      %p26 = scmp.ge.s32.totalorder %s25, 2
      %s27 = scalar_select %p26, 0, %s25
      %s28 = sadd.s32 1, %s19
      %s29 = scalar_select %p26, %s28, %s19
      %p30 = scmp.ge.s32.totalorder %s29, 2
      %s31 = scalar_select %p30, 0, %s29
      %s32 = ssub.s32 %s19, %s31
      %s33 = ssub.s32 %s20, %s27
      %s34 = sor.u32 %s32, %s33
      %p35 = scmp.eq.s32.totalorder %s34, 0
      %s37 = sadd.s32 %s36, 1
      %s38 = scalar_select %p35, %s36, %s37
      %p41 = pneg %p35
      %p42 = scmp.eq.s32.totalorder %s12, 3
      %p43 = por %p41, %p42
      %p44 = scmp.ne.s32.totalorder %s36, %s39
      %p45 = scmp.eq.s32.totalorder %s12, 0
      %p46 = por %p44, %p45
      %p47 = scmp.ne.s32.totalorder %s36, %s39
      %p48 = scmp.eq.s32.totalorder %s17, 3
      %p49 = por %p47, %p48
      %p50 = scmp.ne.s32.totalorder %s39, %s40
      %p51 = scmp.eq.s32.totalorder %s17, 0
      %p52 = por %p50, %p51
      %p53 = scmp.ne.s32.totalorder %s39, %s40
      %p54 = scmp.eq.s32.totalorder %s18, 3
      %p55 = por %p53, %p54
      %p57 = scmp.ne.s32.totalorder %s40, %s56
      %p58 = scmp.eq.s32.totalorder %s18, 0
      %p59 = por %p57, %p58
      %s61 = sadd.s32 %s60, 1
      %p64 = scmp.eq.s32.totalorder %s12, 3
      %p65 = scmp.ne.s32.totalorder %s60, %s62
      %p66 = scmp.eq.s32.totalorder %s12, 0
      %p67 = por %p65, %p66
      %p68 = scmp.ne.s32.totalorder %s60, %s62
      %p69 = scmp.eq.s32.totalorder %s17, 3
      %p70 = por %p68, %p69
      %p71 = scmp.ne.s32.totalorder %s62, %s63
      %p72 = scmp.eq.s32.totalorder %s17, 0
      %p73 = por %p71, %p72
      %p74 = scmp.ne.s32.totalorder %s62, %s63
      %p75 = scmp.eq.s32.totalorder %s18, 3
      %p76 = por %p74, %p75
      %p78 = scmp.ne.s32.totalorder %s63, %s77
      %p79 = scmp.eq.s32.totalorder %s18, 0
      %p80 = por %p78, %p79
      %s82 = sadd.s32 %s81, 1
      %p85 = scmp.eq.s32.totalorder %s12, 3
      %p86 = scmp.ne.s32.totalorder %s81, %s83
      %p87 = scmp.eq.s32.totalorder %s12, 0
      %p88 = por %p86, %p87
      %p89 = scmp.ne.s32.totalorder %s81, %s83
      %p90 = scmp.eq.s32.totalorder %s17, 3
      %p91 = por %p89, %p90
      %p92 = scmp.ne.s32.totalorder %s83, %s84
      %p93 = scmp.eq.s32.totalorder %s17, 0
      %p94 = por %p92, %p93
      %p95 = scmp.ne.s32.totalorder %s83, %s84
      %p96 = scmp.eq.s32.totalorder %s18, 3
      %p97 = por %p95, %p96
      %p99 = scmp.ne.s32.totalorder %s84, %s98
      %p100 = scmp.eq.s32.totalorder %s18, 0
      %p101 = por %p99, %p100
      %s102 = ssub.s32 %s19, %s31
      %s103 = ssub.s32 %s20, %s27
      %s104 = sor.u32 %s102, %s103
      %p105 = scmp.eq.s32.totalorder %s104, 0
      %s107 = sadd.s32 %s106, 1
      %s108 = scalar_select %p105, %s106, %s107
      %p111 = pneg %p105
      %p112 = scmp.eq.s32.totalorder %s12, 3
      %p113 = por %p111, %p112
      %p114 = scmp.ne.s32.totalorder %s106, %s109
      %p115 = scmp.eq.s32.totalorder %s12, 0
      %p116 = por %p114, %p115
      %p117 = scmp.ne.s32.totalorder %s106, %s109
      %p118 = scmp.eq.s32.totalorder %s17, 3
      %p119 = por %p117, %p118
      %p120 = scmp.ne.s32.totalorder %s109, %s110
      %p121 = scmp.eq.s32.totalorder %s17, 0
      %p122 = por %p120, %p121
      %p123 = scmp.ne.s32.totalorder %s109, %s110
      %p124 = scmp.eq.s32.totalorder %s18, 3
      %p125 = por %p123, %p124
      %p127 = scmp.ne.s32.totalorder %s110, %s126
      %p128 = scmp.eq.s32.totalorder %s18, 0
      %p129 = por %p127, %p128
      %p130 = scmp.le.s32.totalorder 1, %s12
      %p131 = scmp.lt.s32.totalorder %s12, 5
      %p132 = pnand %p130, %p131
      %p133 = pneg %p132
      // Predicated region
      $region9: #{tpu_custom_call.1} parent=5 // pred_check
        _
      $region10: #{tpu_custom_call.1} parent=5 // pred_check_branch
        %135 = sbr.rel (%p132) target = $region12
      $region11: #{tpu_custom_call.1} parent=5 // pred_region
        %s136 = ssub.s32 %s12, 1
        // Predicated region
        $region13: #{tpu_custom_call.1} parent=11 // pred_check
          %p137 = pneg %p73
        $region14: #{tpu_custom_call.1} parent=11 // pred_check_branch
          %139 = sbr.rel (%p137) target = $region16
        $region15: #{tpu_custom_call.1} parent=11 // pred_region
          _
        $region16: #{tpu_custom_call.1} parent=11 // pred_fallthru
          _
        // Predicated region
        $region17: #{tpu_custom_call.1} parent=11 // pred_check
          %p140 = pneg %p94
        $region18: #{tpu_custom_call.1} parent=11 // pred_check_branch
          %142 = sbr.rel (%p140) target = $region20
        $region19: #{tpu_custom_call.1} parent=11 // pred_region
          _
        $region20: #{tpu_custom_call.1} parent=11 // pred_fallthru
          _
      $region12: #{tpu_custom_call.1} parent=5 // pred_fallthru
        _
      %p143 = scmp.lt.s32.totalorder %s12, 4
      // Predicated region
      $region21: #{tpu_custom_call.1} parent=5 // pred_check
        %p144 = pneg %p143
      $region22: #{tpu_custom_call.1} parent=5 // pred_check_branch
        %146 = sbr.rel (%p144) target = $region24
      $region23: #{tpu_custom_call.1} parent=5 // pred_region
        // Predicated region
        $region25: #{tpu_custom_call.1} parent=23 // pred_check
          %p147 = pneg %p46
        $region26: #{tpu_custom_call.1} parent=23 // pred_check_branch
          %149 = sbr.rel (%p147) target = $region28
        $region27: #{tpu_custom_call.1} parent=23 // pred_region
          %p150 = scmp.lt.s32.totalorder %s19, 1
          %s151 = scalar_select %p150, %s19, 1
          %p152 = scmp.lt.s32.totalorder %s20, 1
          %s153 = scalar_select %p152, %s20, 1
          %s154 = smul.addr %s153, 30
          %s155 = smul.addr %s151, 60
          %s156 = sadd.s32 %s154, %s155
          %s157 = smul.addr %s156, 8
          %s158 = scalar_lea.vmem %s0, %s157
        $region28: #{tpu_custom_call.1} parent=23 // pred_fallthru
          _
      $region24: #{tpu_custom_call.1} parent=5 // pred_fallthru
        _
      %p159 = scmp.le.s32.totalorder 1, %s12
      %p160 = scmp.lt.s32.totalorder %s12, 5
      %p161 = pnand %p159, %p160
      %p162 = pneg %p161
      // Predicated region
      $region29: #{tpu_custom_call.1} parent=5 // pred_check
        _
      $region30: #{tpu_custom_call.1} parent=5 // pred_check_branch
        %164 = sbr.rel (%p161) target = $region32
      $region31: #{tpu_custom_call.1} parent=5 // pred_region
        %s165 = ssub.s32 %s12, 1
        %p166 = scmp.lt.s32.totalorder %s21, 1
        %s167 = scalar_select %p166, %s21, 1
        %p168 = scmp.lt.s32.totalorder %s22, 1
        %s169 = scalar_select %p168, %s22, 1
        %s170 = smul.addr %s169, 30
        %s171 = smul.addr %s167, 60
        %s172 = sadd.s32 %s170, %s171
        %s173 = smul.addr %s172, 8
        %s174 = scalar_lea.vmem %s0, %s173
        %p175 = pneg %p52
        %p176 = pneg %p49
        %p177 = pneg %p73
        %p178 = pneg %p70
        %p179 = pneg %p94
        %p180 = pneg %p91
        %p181 = pneg %p122
        %p182 = pneg %p119
        %s183 = sand.u32 %s109, 1
        %s184 = scalar_lea.sflag [#allocation4], %s183
        %s185 = sand.u32 %s109, 1
        %s186 = smul.addr %s185, 128
        %s187 = scalar_lea.vmem [#allocation3], %s186
        %p188 = scmp.lt.s32.totalorder %s21, 1
        %s189 = scalar_select %p188, %s21, 1
        %p190 = scmp.lt.s32.totalorder %s22, 1
        %s191 = scalar_select %p190, %s22, 1
        %s192 = smul.addr %s191, 30
        %s193 = smul.addr %s189, 60
        %s194 = sadd.s32 %s192, %s193
        %s195 = smul.addr %s194, 8
        %s196 = scalar_lea.vmem %s0, %s195
        %s197 = smul.u32 8, %s22
        %v199 = vld [vmem:[%s196] sm:$0xff]
        %v200 = vld [vmem:[%s196 + $0x8] sm:$0xff]
        %v201 = vld [vmem:[%s196 + $0x18] sm:$0xff]
        %v202 = vld [vmem:[%s196 + $0x20] sm:$0xff]
        %v203 = vld [vmem:[%s196 + $0x30] sm:$0xff]
        %v204 = vld [vmem:[%s196 + $0x38] sm:$0xff]
        %v205 = vld [vmem:[%s196 + $0x48] sm:$0xff]
        %v206 = vld [vmem:[%s196 + $0x50] sm:$0xff]
        %v207 = vld [vmem:[%s196 + $0x60] sm:$0xff]
        %v208 = vld [vmem:[%s196 + $0x68] sm:$0xff]
        %v209 = vld [vmem:[%s196 + $0x78] sm:$0xff]
        %v210 = vld [vmem:[%s196 + $0x80] sm:$0xff]
        %v211 = vld [vmem:[%s196 + $0x90] sm:$0xff]
        %v212 = vld [vmem:[%s196 + $0x98] sm:$0xff]
        %v213 = vld [vmem:[%s196 + $0xa8] sm:$0xff]
        %v214 = vld [vmem:[%s196 + $0xb0] sm:$0xff]
        %vm215 = vcmask 31744
        %216 = vst.msk [vmem:[#allocation2] sm:$0xff] %vm215, %v199
        %217 = vst.msk [vmem:[#allocation2 + $0x8] sm:$0xff] %vm215, %v200
        %218 = vst.msk [vmem:[#allocation2 + $0x10] sm:$0xff] %vm215, %v201
        %219 = vst.msk [vmem:[#allocation2 + $0x18] sm:$0xff] %vm215, %v202
        %220 = vst.msk [vmem:[#allocation2 + $0x20] sm:$0xff] %vm215, %v203
        %221 = vst.msk [vmem:[#allocation2 + $0x28] sm:$0xff] %vm215, %v204
        %222 = vst.msk [vmem:[#allocation2 + $0x30] sm:$0xff] %vm215, %v205
        %223 = vst.msk [vmem:[#allocation2 + $0x38] sm:$0xff] %vm215, %v206
        %224 = vst.msk [vmem:[#allocation2 + $0x40] sm:$0xff] %vm215, %v207
        %225 = vst.msk [vmem:[#allocation2 + $0x48] sm:$0xff] %vm215, %v208
        %226 = vst.msk [vmem:[#allocation2 + $0x50] sm:$0xff] %vm215, %v209
        %227 = vst.msk [vmem:[#allocation2 + $0x58] sm:$0xff] %vm215, %v210
        %228 = vst.msk [vmem:[#allocation2 + $0x60] sm:$0xff] %vm215, %v211
        %229 = vst.msk [vmem:[#allocation2 + $0x68] sm:$0xff] %vm215, %v212
        %230 = vst.msk [vmem:[#allocation2 + $0x70] sm:$0xff] %vm215, %v213
        %231 = vst.msk [vmem:[#allocation2 + $0x78] sm:$0xff] %vm215, %v214
        %v232 = vld [vmem:[%s196 + $0x1] sm:$0xff]
        %v233 = vld [vmem:[%s196 + $0x9] sm:$0xff]
        %v234 = vld [vmem:[%s196 + $0x19] sm:$0xff]
        %v235 = vld [vmem:[%s196 + $0x21] sm:$0xff]
        %v236 = vld [vmem:[%s196 + $0x31] sm:$0xff]
        %v237 = vld [vmem:[%s196 + $0x39] sm:$0xff]
        %v238 = vld [vmem:[%s196 + $0x49] sm:$0xff]
        %v239 = vld [vmem:[%s196 + $0x51] sm:$0xff]
        %v240 = vld [vmem:[%s196 + $0x61] sm:$0xff]
        %v241 = vld [vmem:[%s196 + $0x69] sm:$0xff]
        %v242 = vld [vmem:[%s196 + $0x79] sm:$0xff]
        %v243 = vld [vmem:[%s196 + $0x81] sm:$0xff]
        %v244 = vld [vmem:[%s196 + $0x91] sm:$0xff]
        %v245 = vld [vmem:[%s196 + $0x99] sm:$0xff]
        %v246 = vld [vmem:[%s196 + $0xa9] sm:$0xff]
        %v247 = vld [vmem:[%s196 + $0xb1] sm:$0xff]
        %264 = vrot.lane.b32.xlu0 %v232, 4
        %v265 = vpop.permute.xlu0 %264
        %266 = vrot.lane.b32.xlu0 %v233, 4
        %v267 = vpop.permute.xlu0 %266
        %268 = vrot.lane.b32.xlu0 %v234, 4
        %v269 = vpop.permute.xlu0 %268
        %270 = vrot.lane.b32.xlu0 %v235, 4
        %v271 = vpop.permute.xlu0 %270
        %272 = vrot.lane.b32.xlu0 %v236, 4
        %v273 = vpop.permute.xlu0 %272
        %274 = vrot.lane.b32.xlu0 %v237, 4
        %v275 = vpop.permute.xlu0 %274
        %276 = vrot.lane.b32.xlu0 %v238, 4
        %v277 = vpop.permute.xlu0 %276
        %278 = vrot.lane.b32.xlu0 %v239, 4
        %v279 = vpop.permute.xlu0 %278
        %280 = vrot.lane.b32.xlu0 %v240, 4
        %v281 = vpop.permute.xlu0 %280
        %282 = vrot.lane.b32.xlu0 %v241, 4
        %v283 = vpop.permute.xlu0 %282
        %284 = vrot.lane.b32.xlu0 %v242, 4
        %v285 = vpop.permute.xlu0 %284
        %286 = vrot.lane.b32.xlu0 %v243, 4
        %v287 = vpop.permute.xlu0 %286
        %288 = vrot.lane.b32.xlu0 %v244, 4
        %v289 = vpop.permute.xlu0 %288
        %290 = vrot.lane.b32.xlu0 %v245, 4
        %v291 = vpop.permute.xlu0 %290
        %292 = vrot.lane.b32.xlu0 %v246, 4
        %v293 = vpop.permute.xlu0 %292
        %294 = vrot.lane.b32.xlu0 %v247, 4
        %v295 = vpop.permute.xlu0 %294
        %vm312 = vcmask 64544
        %313 = vst.msk [vmem:[#allocation2] sm:$0xff] %vm312, %v265
        %314 = vst.msk [vmem:[#allocation2 + $0x8] sm:$0xff] %vm312, %v267
        %315 = vst.msk [vmem:[#allocation2 + $0x10] sm:$0xff] %vm312, %v269
        %316 = vst.msk [vmem:[#allocation2 + $0x18] sm:$0xff] %vm312, %v271
        %317 = vst.msk [vmem:[#allocation2 + $0x20] sm:$0xff] %vm312, %v273
        %318 = vst.msk [vmem:[#allocation2 + $0x28] sm:$0xff] %vm312, %v275
        %319 = vst.msk [vmem:[#allocation2 + $0x30] sm:$0xff] %vm312, %v277
        %320 = vst.msk [vmem:[#allocation2 + $0x38] sm:$0xff] %vm312, %v279
        %321 = vst.msk [vmem:[#allocation2 + $0x40] sm:$0xff] %vm312, %v281
        %322 = vst.msk [vmem:[#allocation2 + $0x48] sm:$0xff] %vm312, %v283
        %323 = vst.msk [vmem:[#allocation2 + $0x50] sm:$0xff] %vm312, %v285
        %324 = vst.msk [vmem:[#allocation2 + $0x58] sm:$0xff] %vm312, %v287
        %325 = vst.msk [vmem:[#allocation2 + $0x60] sm:$0xff] %vm312, %v289
        %326 = vst.msk [vmem:[#allocation2 + $0x68] sm:$0xff] %vm312, %v291
        %327 = vst.msk [vmem:[#allocation2 + $0x70] sm:$0xff] %vm312, %v293
        %328 = vst.msk [vmem:[#allocation2 + $0x78] sm:$0xff] %vm312, %v295
        %v329 = vld [vmem:[%s196 + $0x2] sm:$0xff]
        %v330 = vld [vmem:[%s196 + $0xa] sm:$0xff]
        %v331 = vld [vmem:[%s196 + $0x1a] sm:$0xff]
        %v332 = vld [vmem:[%s196 + $0x22] sm:$0xff]
        %v333 = vld [vmem:[%s196 + $0x32] sm:$0xff]
        %v334 = vld [vmem:[%s196 + $0x3a] sm:$0xff]
        %v335 = vld [vmem:[%s196 + $0x4a] sm:$0xff]
        %v336 = vld [vmem:[%s196 + $0x52] sm:$0xff]
        %v337 = vld [vmem:[%s196 + $0x62] sm:$0xff]
        %v338 = vld [vmem:[%s196 + $0x6a] sm:$0xff]
        %v339 = vld [vmem:[%s196 + $0x7a] sm:$0xff]
        %v340 = vld [vmem:[%s196 + $0x82] sm:$0xff]
        %v341 = vld [vmem:[%s196 + $0x92] sm:$0xff]
        %v342 = vld [vmem:[%s196 + $0x9a] sm:$0xff]
        %v343 = vld [vmem:[%s196 + $0xaa] sm:$0xff]
        %v344 = vld [vmem:[%s196 + $0xb2] sm:$0xff]
        %361 = vrot.lane.b32.xlu0 %v329, 8
        %v362 = vpop.permute.xlu0 %361
        %363 = vrot.lane.b32.xlu0 %v330, 8
        %v364 = vpop.permute.xlu0 %363
        %365 = vrot.lane.b32.xlu0 %v331, 8
        %v366 = vpop.permute.xlu0 %365
        %367 = vrot.lane.b32.xlu0 %v332, 8
        %v368 = vpop.permute.xlu0 %367
        %369 = vrot.lane.b32.xlu0 %v333, 8
        %v370 = vpop.permute.xlu0 %369
        %371 = vrot.lane.b32.xlu0 %v334, 8
        %v372 = vpop.permute.xlu0 %371
        %373 = vrot.lane.b32.xlu0 %v335, 8
        %v374 = vpop.permute.xlu0 %373
        %375 = vrot.lane.b32.xlu0 %v336, 8
        %v376 = vpop.permute.xlu0 %375
        %377 = vrot.lane.b32.xlu0 %v337, 8
        %v378 = vpop.permute.xlu0 %377
        %379 = vrot.lane.b32.xlu0 %v338, 8
        %v380 = vpop.permute.xlu0 %379
        %381 = vrot.lane.b32.xlu0 %v339, 8
        %v382 = vpop.permute.xlu0 %381
        %383 = vrot.lane.b32.xlu0 %v340, 8
        %v384 = vpop.permute.xlu0 %383
        %385 = vrot.lane.b32.xlu0 %v341, 8
        %v386 = vpop.permute.xlu0 %385
        %387 = vrot.lane.b32.xlu0 %v342, 8
        %v388 = vpop.permute.xlu0 %387
        %389 = vrot.lane.b32.xlu0 %v343, 8
        %v390 = vpop.permute.xlu0 %389
        %391 = vrot.lane.b32.xlu0 %v344, 8
        %v392 = vpop.permute.xlu0 %391
        %vm409 = vcmask 97344
        %410 = vst.msk [vmem:[#allocation2] sm:$0xff] %vm409, %v362
        %411 = vst.msk [vmem:[#allocation2 + $0x8] sm:$0xff] %vm409, %v364
        %412 = vst.msk [vmem:[#allocation2 + $0x10] sm:$0xff] %vm409, %v366
        %413 = vst.msk [vmem:[#allocation2 + $0x18] sm:$0xff] %vm409, %v368
        %414 = vst.msk [vmem:[#allocation2 + $0x20] sm:$0xff] %vm409, %v370
        %415 = vst.msk [vmem:[#allocation2 + $0x28] sm:$0xff] %vm409, %v372
        %416 = vst.msk [vmem:[#allocation2 + $0x30] sm:$0xff] %vm409, %v374
        %417 = vst.msk [vmem:[#allocation2 + $0x38] sm:$0xff] %vm409, %v376
        %418 = vst.msk [vmem:[#allocation2 + $0x40] sm:$0xff] %vm409, %v378
        %419 = vst.msk [vmem:[#allocation2 + $0x48] sm:$0xff] %vm409, %v380
        %420 = vst.msk [vmem:[#allocation2 + $0x50] sm:$0xff] %vm409, %v382
        %421 = vst.msk [vmem:[#allocation2 + $0x58] sm:$0xff] %vm409, %v384
        %422 = vst.msk [vmem:[#allocation2 + $0x60] sm:$0xff] %vm409, %v386
        %423 = vst.msk [vmem:[#allocation2 + $0x68] sm:$0xff] %vm409, %v388
        %424 = vst.msk [vmem:[#allocation2 + $0x70] sm:$0xff] %vm409, %v390
        %425 = vst.msk [vmem:[#allocation2 + $0x78] sm:$0xff] %vm409, %v392
        %s426 = scalar_lea.vmem %s196, 24
        %v427 = vld [vmem:[%s426] sm:$0xff]
        %v428 = vld [vmem:[%s426 + $0x8] sm:$0xff]
        %v429 = vld [vmem:[%s426 + $0x18] sm:$0xff]
        %v430 = vld [vmem:[%s426 + $0x20] sm:$0xff]
        %v431 = vld [vmem:[%s426 + $0x30] sm:$0xff]
        %v432 = vld [vmem:[%s426 + $0x38] sm:$0xff]
        %v433 = vld [vmem:[%s426 + $0x48] sm:$0xff]
        %v434 = vld [vmem:[%s426 + $0x50] sm:$0xff]
        %v435 = vld [vmem:[%s426 + $0x60] sm:$0xff]
        %v436 = vld [vmem:[%s426 + $0x68] sm:$0xff]
        %v437 = vld [vmem:[%s426 + $0x78] sm:$0xff]
        %v438 = vld [vmem:[%s426 + $0x80] sm:$0xff]
        %v439 = vld [vmem:[%s426 + $0x90] sm:$0xff]
        %v440 = vld [vmem:[%s426 + $0x98] sm:$0xff]
        %v441 = vld [vmem:[%s426 + $0xa8] sm:$0xff]
        %v442 = vld [vmem:[%s426 + $0xb0] sm:$0xff]
        %459 = vrot.lane.b32.xlu0 %v427, 12
        %v460 = vpop.permute.xlu0 %459
        %461 = vrot.lane.b32.xlu0 %v428, 12
        %v462 = vpop.permute.xlu0 %461
        %463 = vrot.lane.b32.xlu0 %v429, 12
        %v464 = vpop.permute.xlu0 %463
        %465 = vrot.lane.b32.xlu0 %v430, 12
        %v466 = vpop.permute.xlu0 %465
        %467 = vrot.lane.b32.xlu0 %v431, 12
        %v468 = vpop.permute.xlu0 %467
        %469 = vrot.lane.b32.xlu0 %v432, 12
        %v470 = vpop.permute.xlu0 %469
        %471 = vrot.lane.b32.xlu0 %v433, 12
        %v472 = vpop.permute.xlu0 %471
        %473 = vrot.lane.b32.xlu0 %v434, 12
        %v474 = vpop.permute.xlu0 %473
        %475 = vrot.lane.b32.xlu0 %v435, 12
        %v476 = vpop.permute.xlu0 %475
        %477 = vrot.lane.b32.xlu0 %v436, 12
        %v478 = vpop.permute.xlu0 %477
        %479 = vrot.lane.b32.xlu0 %v437, 12
        %v480 = vpop.permute.xlu0 %479
        %481 = vrot.lane.b32.xlu0 %v438, 12
        %v482 = vpop.permute.xlu0 %481
        %483 = vrot.lane.b32.xlu0 %v439, 12
        %v484 = vpop.permute.xlu0 %483
        %485 = vrot.lane.b32.xlu0 %v440, 12
        %v486 = vpop.permute.xlu0 %485
        %487 = vrot.lane.b32.xlu0 %v441, 12
        %v488 = vpop.permute.xlu0 %487
        %489 = vrot.lane.b32.xlu0 %v442, 12
        %v490 = vpop.permute.xlu0 %489
        %vm507 = vcmask 130144
        %508 = vst.msk [vmem:[#allocation2] sm:$0xff] %vm507, %v460
        %509 = vst.msk [vmem:[#allocation2 + $0x8] sm:$0xff] %vm507, %v462
        %510 = vst.msk [vmem:[#allocation2 + $0x10] sm:$0xff] %vm507, %v464
        %511 = vst.msk [vmem:[#allocation2 + $0x18] sm:$0xff] %vm507, %v466
        %512 = vst.msk [vmem:[#allocation2 + $0x20] sm:$0xff] %vm507, %v468
        %513 = vst.msk [vmem:[#allocation2 + $0x28] sm:$0xff] %vm507, %v470
        %514 = vst.msk [vmem:[#allocation2 + $0x30] sm:$0xff] %vm507, %v472
        %515 = vst.msk [vmem:[#allocation2 + $0x38] sm:$0xff] %vm507, %v474
        %516 = vst.msk [vmem:[#allocation2 + $0x40] sm:$0xff] %vm507, %v476
        %517 = vst.msk [vmem:[#allocation2 + $0x48] sm:$0xff] %vm507, %v478
        %518 = vst.msk [vmem:[#allocation2 + $0x50] sm:$0xff] %vm507, %v480
        %519 = vst.msk [vmem:[#allocation2 + $0x58] sm:$0xff] %vm507, %v482
        %520 = vst.msk [vmem:[#allocation2 + $0x60] sm:$0xff] %vm507, %v484
        %521 = vst.msk [vmem:[#allocation2 + $0x68] sm:$0xff] %vm507, %v486
        %522 = vst.msk [vmem:[#allocation2 + $0x70] sm:$0xff] %vm507, %v488
        %523 = vst.msk [vmem:[#allocation2 + $0x78] sm:$0xff] %vm507, %v490
        %v524 = vld [vmem:[%s426 + $0x1] sm:$0xff]
        %v525 = vld [vmem:[%s426 + $0x9] sm:$0xff]
        %v526 = vld [vmem:[%s426 + $0x19] sm:$0xff]
        %v527 = vld [vmem:[%s426 + $0x21] sm:$0xff]
        %v528 = vld [vmem:[%s426 + $0x31] sm:$0xff]
        %v529 = vld [vmem:[%s426 + $0x39] sm:$0xff]
        %v530 = vld [vmem:[%s426 + $0x49] sm:$0xff]
        %v531 = vld [vmem:[%s426 + $0x51] sm:$0xff]
        %v532 = vld [vmem:[%s426 + $0x61] sm:$0xff]
        %v533 = vld [vmem:[%s426 + $0x69] sm:$0xff]
        %v534 = vld [vmem:[%s426 + $0x79] sm:$0xff]
        %v535 = vld [vmem:[%s426 + $0x81] sm:$0xff]
        %v536 = vld [vmem:[%s426 + $0x91] sm:$0xff]
        %v537 = vld [vmem:[%s426 + $0x99] sm:$0xff]
        %v538 = vld [vmem:[%s426 + $0xa9] sm:$0xff]
        %v539 = vld [vmem:[%s426 + $0xb1] sm:$0xff]
        %556 = vrot.lane.b32.xlu0 %v524, 16
        %v557 = vpop.permute.xlu0 %556
        %558 = vrot.lane.b32.xlu0 %v525, 16
        %v559 = vpop.permute.xlu0 %558
        %560 = vrot.lane.b32.xlu0 %v526, 16
        %v561 = vpop.permute.xlu0 %560
        %562 = vrot.lane.b32.xlu0 %v527, 16
        %v563 = vpop.permute.xlu0 %562
        %564 = vrot.lane.b32.xlu0 %v528, 16
        %v565 = vpop.permute.xlu0 %564
        %566 = vrot.lane.b32.xlu0 %v529, 16
        %v567 = vpop.permute.xlu0 %566
        %568 = vrot.lane.b32.xlu0 %v530, 16
        %v569 = vpop.permute.xlu0 %568
        %570 = vrot.lane.b32.xlu0 %v531, 16
        %v571 = vpop.permute.xlu0 %570
        %572 = vrot.lane.b32.xlu0 %v532, 16
        %v573 = vpop.permute.xlu0 %572
        %574 = vrot.lane.b32.xlu0 %v533, 16
        %v575 = vpop.permute.xlu0 %574
        %576 = vrot.lane.b32.xlu0 %v534, 16
        %v577 = vpop.permute.xlu0 %576
        %578 = vrot.lane.b32.xlu0 %v535, 16
        %v579 = vpop.permute.xlu0 %578
        %580 = vrot.lane.b32.xlu0 %v536, 16
        %v581 = vpop.permute.xlu0 %580
        %582 = vrot.lane.b32.xlu0 %v537, 16
        %v583 = vpop.permute.xlu0 %582
        %584 = vrot.lane.b32.xlu0 %v538, 16
        %v585 = vpop.permute.xlu0 %584
        %586 = vrot.lane.b32.xlu0 %v539, 16
        %v587 = vpop.permute.xlu0 %586
        %vm604 = vcmask 162944
        %605 = vst.msk [vmem:[#allocation2] sm:$0xff] %vm604, %v557
        %606 = vst.msk [vmem:[#allocation2 + $0x8] sm:$0xff] %vm604, %v559
        %607 = vst.msk [vmem:[#allocation2 + $0x10] sm:$0xff] %vm604, %v561
        %608 = vst.msk [vmem:[#allocation2 + $0x18] sm:$0xff] %vm604, %v563
        %609 = vst.msk [vmem:[#allocation2 + $0x20] sm:$0xff] %vm604, %v565
        %610 = vst.msk [vmem:[#allocation2 + $0x28] sm:$0xff] %vm604, %v567
        %611 = vst.msk [vmem:[#allocation2 + $0x30] sm:$0xff] %vm604, %v569
        %612 = vst.msk [vmem:[#allocation2 + $0x38] sm:$0xff] %vm604, %v571
        %613 = vst.msk [vmem:[#allocation2 + $0x40] sm:$0xff] %vm604, %v573
        %614 = vst.msk [vmem:[#allocation2 + $0x48] sm:$0xff] %vm604, %v575
        %615 = vst.msk [vmem:[#allocation2 + $0x50] sm:$0xff] %vm604, %v577
        %616 = vst.msk [vmem:[#allocation2 + $0x58] sm:$0xff] %vm604, %v579
        %617 = vst.msk [vmem:[#allocation2 + $0x60] sm:$0xff] %vm604, %v581
        %618 = vst.msk [vmem:[#allocation2 + $0x68] sm:$0xff] %vm604, %v583
        %619 = vst.msk [vmem:[#allocation2 + $0x70] sm:$0xff] %vm604, %v585
        %620 = vst.msk [vmem:[#allocation2 + $0x78] sm:$0xff] %vm604, %v587
        %v621 = vld [vmem:[%s426 + $0x2] sm:$0xff]
        %v622 = vld [vmem:[%s426 + $0xa] sm:$0xff]
        %v623 = vld [vmem:[%s426 + $0x1a] sm:$0xff]
        %v624 = vld [vmem:[%s426 + $0x22] sm:$0xff]
        %v625 = vld [vmem:[%s426 + $0x32] sm:$0xff]
        %v626 = vld [vmem:[%s426 + $0x3a] sm:$0xff]
        %v627 = vld [vmem:[%s426 + $0x4a] sm:$0xff]
        %v628 = vld [vmem:[%s426 + $0x52] sm:$0xff]
        %v629 = vld [vmem:[%s426 + $0x62] sm:$0xff]
        %v630 = vld [vmem:[%s426 + $0x6a] sm:$0xff]
        %v631 = vld [vmem:[%s426 + $0x7a] sm:$0xff]
        %v632 = vld [vmem:[%s426 + $0x82] sm:$0xff]
        %v633 = vld [vmem:[%s426 + $0x92] sm:$0xff]
        %v634 = vld [vmem:[%s426 + $0x9a] sm:$0xff]
        %v635 = vld [vmem:[%s426 + $0xaa] sm:$0xff]
        %v636 = vld [vmem:[%s426 + $0xb2] sm:$0xff]
        %653 = vrot.lane.b32.xlu0 %v621, 20
        %v654 = vpop.permute.xlu0 %653
        %655 = vrot.lane.b32.xlu0 %v622, 20
        %v656 = vpop.permute.xlu0 %655
        %657 = vrot.lane.b32.xlu0 %v623, 20
        %v658 = vpop.permute.xlu0 %657
        %659 = vrot.lane.b32.xlu0 %v624, 20
        %v660 = vpop.permute.xlu0 %659
        %661 = vrot.lane.b32.xlu0 %v625, 20
        %v662 = vpop.permute.xlu0 %661
        %663 = vrot.lane.b32.xlu0 %v626, 20
        %v664 = vpop.permute.xlu0 %663
        %665 = vrot.lane.b32.xlu0 %v627, 20
        %v666 = vpop.permute.xlu0 %665
        %667 = vrot.lane.b32.xlu0 %v628, 20
        %v668 = vpop.permute.xlu0 %667
        %669 = vrot.lane.b32.xlu0 %v629, 20
        %v670 = vpop.permute.xlu0 %669
        %671 = vrot.lane.b32.xlu0 %v630, 20
        %v672 = vpop.permute.xlu0 %671
        %673 = vrot.lane.b32.xlu0 %v631, 20
        %v674 = vpop.permute.xlu0 %673
        %675 = vrot.lane.b32.xlu0 %v632, 20
        %v676 = vpop.permute.xlu0 %675
        %677 = vrot.lane.b32.xlu0 %v633, 20
        %v678 = vpop.permute.xlu0 %677
        %679 = vrot.lane.b32.xlu0 %v634, 20
        %v680 = vpop.permute.xlu0 %679
        %681 = vrot.lane.b32.xlu0 %v635, 20
        %v682 = vpop.permute.xlu0 %681
        %683 = vrot.lane.b32.xlu0 %v636, 20
        %v684 = vpop.permute.xlu0 %683
        %vm701 = vcmask 195744
        %702 = vst.msk [vmem:[#allocation2] sm:$0xff] %vm701, %v654
        %703 = vst.msk [vmem:[#allocation2 + $0x8] sm:$0xff] %vm701, %v656
        %704 = vst.msk [vmem:[#allocation2 + $0x10] sm:$0xff] %vm701, %v658
        %705 = vst.msk [vmem:[#allocation2 + $0x18] sm:$0xff] %vm701, %v660
        %706 = vst.msk [vmem:[#allocation2 + $0x20] sm:$0xff] %vm701, %v662
        %707 = vst.msk [vmem:[#allocation2 + $0x28] sm:$0xff] %vm701, %v664
        %708 = vst.msk [vmem:[#allocation2 + $0x30] sm:$0xff] %vm701, %v666
        %709 = vst.msk [vmem:[#allocation2 + $0x38] sm:$0xff] %vm701, %v668
        %710 = vst.msk [vmem:[#allocation2 + $0x40] sm:$0xff] %vm701, %v670
        %711 = vst.msk [vmem:[#allocation2 + $0x48] sm:$0xff] %vm701, %v672
        %712 = vst.msk [vmem:[#allocation2 + $0x50] sm:$0xff] %vm701, %v674
        %713 = vst.msk [vmem:[#allocation2 + $0x58] sm:$0xff] %vm701, %v676
        %714 = vst.msk [vmem:[#allocation2 + $0x60] sm:$0xff] %vm701, %v678
        %715 = vst.msk [vmem:[#allocation2 + $0x68] sm:$0xff] %vm701, %v680
        %716 = vst.msk [vmem:[#allocation2 + $0x70] sm:$0xff] %vm701, %v682
        %717 = vst.msk [vmem:[#allocation2 + $0x78] sm:$0xff] %vm701, %v684
        %s718 = scalar_lea.vmem %s196, 48
        %v719 = vld [vmem:[%s718] sm:$0xff]
        %v720 = vld [vmem:[%s718 + $0x8] sm:$0xff]
        %v721 = vld [vmem:[%s718 + $0x18] sm:$0xff]
        %v722 = vld [vmem:[%s718 + $0x20] sm:$0xff]
        %v723 = vld [vmem:[%s718 + $0x30] sm:$0xff]
        %v724 = vld [vmem:[%s718 + $0x38] sm:$0xff]
        %v725 = vld [vmem:[%s718 + $0x48] sm:$0xff]
        %v726 = vld [vmem:[%s718 + $0x50] sm:$0xff]
        %v727 = vld [vmem:[%s718 + $0x60] sm:$0xff]
        %v728 = vld [vmem:[%s718 + $0x68] sm:$0xff]
        %v729 = vld [vmem:[%s718 + $0x78] sm:$0xff]
        %v730 = vld [vmem:[%s718 + $0x80] sm:$0xff]
        %v731 = vld [vmem:[%s718 + $0x90] sm:$0xff]
        %v732 = vld [vmem:[%s718 + $0x98] sm:$0xff]
        %v733 = vld [vmem:[%s718 + $0xa8] sm:$0xff]
        %v734 = vld [vmem:[%s718 + $0xb0] sm:$0xff]
        %751 = vrot.lane.b32.xlu0 %v719, 24
        %v752 = vpop.permute.xlu0 %751
        %753 = vrot.lane.b32.xlu0 %v720, 24
        %v754 = vpop.permute.xlu0 %753
        %755 = vrot.lane.b32.xlu0 %v721, 24
        %v756 = vpop.permute.xlu0 %755
        %757 = vrot.lane.b32.xlu0 %v722, 24
        %v758 = vpop.permute.xlu0 %757
        %759 = vrot.lane.b32.xlu0 %v723, 24
        %v760 = vpop.permute.xlu0 %759
        %761 = vrot.lane.b32.xlu0 %v724, 24
        %v762 = vpop.permute.xlu0 %761
        %763 = vrot.lane.b32.xlu0 %v725, 24
        %v764 = vpop.permute.xlu0 %763
        %765 = vrot.lane.b32.xlu0 %v726, 24
        %v766 = vpop.permute.xlu0 %765
        %767 = vrot.lane.b32.xlu0 %v727, 24
        %v768 = vpop.permute.xlu0 %767
        %769 = vrot.lane.b32.xlu0 %v728, 24
        %v770 = vpop.permute.xlu0 %769
        %771 = vrot.lane.b32.xlu0 %v729, 24
        %v772 = vpop.permute.xlu0 %771
        %773 = vrot.lane.b32.xlu0 %v730, 24
        %v774 = vpop.permute.xlu0 %773
        %775 = vrot.lane.b32.xlu0 %v731, 24
        %v776 = vpop.permute.xlu0 %775
        %777 = vrot.lane.b32.xlu0 %v732, 24
        %v778 = vpop.permute.xlu0 %777
        %779 = vrot.lane.b32.xlu0 %v733, 24
        %v780 = vpop.permute.xlu0 %779
        %781 = vrot.lane.b32.xlu0 %v734, 24
        %v782 = vpop.permute.xlu0 %781
        %vm799 = vcmask 228544
        %800 = vst.msk [vmem:[#allocation2] sm:$0xff] %vm799, %v752
        %801 = vst.msk [vmem:[#allocation2 + $0x8] sm:$0xff] %vm799, %v754
        %802 = vst.msk [vmem:[#allocation2 + $0x10] sm:$0xff] %vm799, %v756
        %803 = vst.msk [vmem:[#allocation2 + $0x18] sm:$0xff] %vm799, %v758
        %804 = vst.msk [vmem:[#allocation2 + $0x20] sm:$0xff] %vm799, %v760
        %805 = vst.msk [vmem:[#allocation2 + $0x28] sm:$0xff] %vm799, %v762
        %806 = vst.msk [vmem:[#allocation2 + $0x30] sm:$0xff] %vm799, %v764
        %807 = vst.msk [vmem:[#allocation2 + $0x38] sm:$0xff] %vm799, %v766
        %808 = vst.msk [vmem:[#allocation2 + $0x40] sm:$0xff] %vm799, %v768
        %809 = vst.msk [vmem:[#allocation2 + $0x48] sm:$0xff] %vm799, %v770
        %810 = vst.msk [vmem:[#allocation2 + $0x50] sm:$0xff] %vm799, %v772
        %811 = vst.msk [vmem:[#allocation2 + $0x58] sm:$0xff] %vm799, %v774
        %812 = vst.msk [vmem:[#allocation2 + $0x60] sm:$0xff] %vm799, %v776
        %813 = vst.msk [vmem:[#allocation2 + $0x68] sm:$0xff] %vm799, %v778
        %814 = vst.msk [vmem:[#allocation2 + $0x70] sm:$0xff] %vm799, %v780
        %815 = vst.msk [vmem:[#allocation2 + $0x78] sm:$0xff] %vm799, %v782
        %v816 = vld [vmem:[%s718 + $0x1] sm:$0xff]
        %v817 = vld [vmem:[%s718 + $0x9] sm:$0xff]
        %v818 = vld [vmem:[%s718 + $0x19] sm:$0xff]
        %v819 = vld [vmem:[%s718 + $0x21] sm:$0xff]
        %v820 = vld [vmem:[%s718 + $0x31] sm:$0xff]
        %v821 = vld [vmem:[%s718 + $0x39] sm:$0xff]
        %v822 = vld [vmem:[%s718 + $0x49] sm:$0xff]
        %v823 = vld [vmem:[%s718 + $0x51] sm:$0xff]
        %v824 = vld [vmem:[%s718 + $0x61] sm:$0xff]
        %v825 = vld [vmem:[%s718 + $0x69] sm:$0xff]
        %v826 = vld [vmem:[%s718 + $0x79] sm:$0xff]
        %v827 = vld [vmem:[%s718 + $0x81] sm:$0xff]
        %v828 = vld [vmem:[%s718 + $0x91] sm:$0xff]
        %v829 = vld [vmem:[%s718 + $0x99] sm:$0xff]
        %v830 = vld [vmem:[%s718 + $0xa9] sm:$0xff]
        %v831 = vld [vmem:[%s718 + $0xb1] sm:$0xff]
        %848 = vrot.lane.b32.xlu0 %v816, 28
        %v849 = vpop.permute.xlu0 %848
        %850 = vrot.lane.b32.xlu0 %v817, 28
        %v851 = vpop.permute.xlu0 %850
        %852 = vrot.lane.b32.xlu0 %v818, 28
        %v853 = vpop.permute.xlu0 %852
        %854 = vrot.lane.b32.xlu0 %v819, 28
        %v855 = vpop.permute.xlu0 %854
        %856 = vrot.lane.b32.xlu0 %v820, 28
        %v857 = vpop.permute.xlu0 %856
        %858 = vrot.lane.b32.xlu0 %v821, 28
        %v859 = vpop.permute.xlu0 %858
        %860 = vrot.lane.b32.xlu0 %v822, 28
        %v861 = vpop.permute.xlu0 %860
        %862 = vrot.lane.b32.xlu0 %v823, 28
        %v863 = vpop.permute.xlu0 %862
        %864 = vrot.lane.b32.xlu0 %v824, 28
        %v865 = vpop.permute.xlu0 %864
        %866 = vrot.lane.b32.xlu0 %v825, 28
        %v867 = vpop.permute.xlu0 %866
        %868 = vrot.lane.b32.xlu0 %v826, 28
        %v869 = vpop.permute.xlu0 %868
        %870 = vrot.lane.b32.xlu0 %v827, 28
        %v871 = vpop.permute.xlu0 %870
        %872 = vrot.lane.b32.xlu0 %v828, 28
        %v873 = vpop.permute.xlu0 %872
        %874 = vrot.lane.b32.xlu0 %v829, 28
        %v875 = vpop.permute.xlu0 %874
        %876 = vrot.lane.b32.xlu0 %v830, 28
        %v877 = vpop.permute.xlu0 %876
        %878 = vrot.lane.b32.xlu0 %v831, 28
        %v879 = vpop.permute.xlu0 %878
        %vm896 = vcmask 261344
        %897 = vst.msk [vmem:[#allocation2] sm:$0xff] %vm896, %v849
        %898 = vst.msk [vmem:[#allocation2 + $0x8] sm:$0xff] %vm896, %v851
        %899 = vst.msk [vmem:[#allocation2 + $0x10] sm:$0xff] %vm896, %v853
        %900 = vst.msk [vmem:[#allocation2 + $0x18] sm:$0xff] %vm896, %v855
        %901 = vst.msk [vmem:[#allocation2 + $0x20] sm:$0xff] %vm896, %v857
        %902 = vst.msk [vmem:[#allocation2 + $0x28] sm:$0xff] %vm896, %v859
        %903 = vst.msk [vmem:[#allocation2 + $0x30] sm:$0xff] %vm896, %v861
        %904 = vst.msk [vmem:[#allocation2 + $0x38] sm:$0xff] %vm896, %v863
        %905 = vst.msk [vmem:[#allocation2 + $0x40] sm:$0xff] %vm896, %v865
        %906 = vst.msk [vmem:[#allocation2 + $0x48] sm:$0xff] %vm896, %v867
        %907 = vst.msk [vmem:[#allocation2 + $0x50] sm:$0xff] %vm896, %v869
        %908 = vst.msk [vmem:[#allocation2 + $0x58] sm:$0xff] %vm896, %v871
        %909 = vst.msk [vmem:[#allocation2 + $0x60] sm:$0xff] %vm896, %v873
        %910 = vst.msk [vmem:[#allocation2 + $0x68] sm:$0xff] %vm896, %v875
        %911 = vst.msk [vmem:[#allocation2 + $0x70] sm:$0xff] %vm896, %v877
        %912 = vst.msk [vmem:[#allocation2 + $0x78] sm:$0xff] %vm896, %v879
        %v913 = vld [vmem:[%s718 + $0x2] sm:$0xff]
        %v914 = vld [vmem:[%s718 + $0xa] sm:$0xff]
        %v915 = vld [vmem:[%s718 + $0x1a] sm:$0xff]
        %v916 = vld [vmem:[%s718 + $0x22] sm:$0xff]
        %v917 = vld [vmem:[%s718 + $0x32] sm:$0xff]
        %v918 = vld [vmem:[%s718 + $0x3a] sm:$0xff]
        %v919 = vld [vmem:[%s718 + $0x4a] sm:$0xff]
        %v920 = vld [vmem:[%s718 + $0x52] sm:$0xff]
        %v921 = vld [vmem:[%s718 + $0x62] sm:$0xff]
        %v922 = vld [vmem:[%s718 + $0x6a] sm:$0xff]
        %v923 = vld [vmem:[%s718 + $0x7a] sm:$0xff]
        %v924 = vld [vmem:[%s718 + $0x82] sm:$0xff]
        %v925 = vld [vmem:[%s718 + $0x92] sm:$0xff]
        %v926 = vld [vmem:[%s718 + $0x9a] sm:$0xff]
        %v927 = vld [vmem:[%s718 + $0xaa] sm:$0xff]
        %v928 = vld [vmem:[%s718 + $0xb2] sm:$0xff]
        %945 = vrot.lane.b32.xlu0 %v913, 32
        %v946 = vpop.permute.xlu0 %945
        %947 = vrot.lane.b32.xlu0 %v914, 32
        %v948 = vpop.permute.xlu0 %947
        %949 = vrot.lane.b32.xlu0 %v915, 32
        %v950 = vpop.permute.xlu0 %949
        %951 = vrot.lane.b32.xlu0 %v916, 32
        %v952 = vpop.permute.xlu0 %951
        %953 = vrot.lane.b32.xlu0 %v917, 32
        %v954 = vpop.permute.xlu0 %953
        %955 = vrot.lane.b32.xlu0 %v918, 32
        %v956 = vpop.permute.xlu0 %955
        %957 = vrot.lane.b32.xlu0 %v919, 32
        %v958 = vpop.permute.xlu0 %957
        %959 = vrot.lane.b32.xlu0 %v920, 32
        %v960 = vpop.permute.xlu0 %959
        %961 = vrot.lane.b32.xlu0 %v921, 32
        %v962 = vpop.permute.xlu0 %961
        %963 = vrot.lane.b32.xlu0 %v922, 32
        %v964 = vpop.permute.xlu0 %963
        %965 = vrot.lane.b32.xlu0 %v923, 32
        %v966 = vpop.permute.xlu0 %965
        %967 = vrot.lane.b32.xlu0 %v924, 32
        %v968 = vpop.permute.xlu0 %967
        %969 = vrot.lane.b32.xlu0 %v925, 32
        %v970 = vpop.permute.xlu0 %969
        %971 = vrot.lane.b32.xlu0 %v926, 32
        %v972 = vpop.permute.xlu0 %971
        %973 = vrot.lane.b32.xlu0 %v927, 32
        %v974 = vpop.permute.xlu0 %973
        %975 = vrot.lane.b32.xlu0 %v928, 32
        %v976 = vpop.permute.xlu0 %975
        %vm993 = vcmask 294144
        %994 = vst.msk [vmem:[#allocation2] sm:$0xff] %vm993, %v946
        %995 = vst.msk [vmem:[#allocation2 + $0x8] sm:$0xff] %vm993, %v948
        %996 = vst.msk [vmem:[#allocation2 + $0x10] sm:$0xff] %vm993, %v950
        %997 = vst.msk [vmem:[#allocation2 + $0x18] sm:$0xff] %vm993, %v952
        %998 = vst.msk [vmem:[#allocation2 + $0x20] sm:$0xff] %vm993, %v954
        %999 = vst.msk [vmem:[#allocation2 + $0x28] sm:$0xff] %vm993, %v956
        %1000 = vst.msk [vmem:[#allocation2 + $0x30] sm:$0xff] %vm993, %v958
        %1001 = vst.msk [vmem:[#allocation2 + $0x38] sm:$0xff] %vm993, %v960
        %1002 = vst.msk [vmem:[#allocation2 + $0x40] sm:$0xff] %vm993, %v962
        %1003 = vst.msk [vmem:[#allocation2 + $0x48] sm:$0xff] %vm993, %v964
        %1004 = vst.msk [vmem:[#allocation2 + $0x50] sm:$0xff] %vm993, %v966
        %1005 = vst.msk [vmem:[#allocation2 + $0x58] sm:$0xff] %vm993, %v968
        %1006 = vst.msk [vmem:[#allocation2 + $0x60] sm:$0xff] %vm993, %v970
        %1007 = vst.msk [vmem:[#allocation2 + $0x68] sm:$0xff] %vm993, %v972
        %1008 = vst.msk [vmem:[#allocation2 + $0x70] sm:$0xff] %vm993, %v974
        %1009 = vst.msk [vmem:[#allocation2 + $0x78] sm:$0xff] %vm993, %v976
        %v1010 = vld [vmem:[#allocation2] sm:$0xff]
        %v1011 = vld [vmem:[#allocation2 + $0x8] sm:$0xff]
        %v1012 = vld [vmem:[#allocation2 + $0x10] sm:$0xff]
        %v1013 = vld [vmem:[#allocation2 + $0x18] sm:$0xff]
        %v1014 = vld [vmem:[#allocation2 + $0x20] sm:$0xff]
        %v1015 = vld [vmem:[#allocation2 + $0x28] sm:$0xff]
        %v1016 = vld [vmem:[#allocation2 + $0x30] sm:$0xff]
        %v1017 = vld [vmem:[#allocation2 + $0x38] sm:$0xff]
        %v1018 = vld [vmem:[#allocation2 + $0x40] sm:$0xff]
        %v1019 = vld [vmem:[#allocation2 + $0x48] sm:$0xff]
        %v1020 = vld [vmem:[#allocation2 + $0x50] sm:$0xff]
        %v1021 = vld [vmem:[#allocation2 + $0x58] sm:$0xff]
        %v1022 = vld [vmem:[#allocation2 + $0x60] sm:$0xff]
        %v1023 = vld [vmem:[#allocation2 + $0x68] sm:$0xff]
        %v1024 = vld [vmem:[#allocation2 + $0x70] sm:$0xff]
        %v1025 = vld [vmem:[#allocation2 + $0x78] sm:$0xff]
        %v1026 = vpack.c.bf16 %v1011, %v1010
        %v1027 = vpack.c.bf16 %v1013, %v1012
        %v1028 = vpack.c.bf16 %v1015, %v1014
        %v1029 = vpack.c.bf16 %v1017, %v1016
        %v1030 = vpack.c.bf16 %v1019, %v1018
        %v1031 = vpack.c.bf16 %v1021, %v1020
        %v1032 = vpack.c.bf16 %v1023, %v1022
        %v1033 = vpack.c.bf16 %v1025, %v1024
        %v1034 = vld [vmem:[%s1] sm:$0xf]
        %v1035 = vld [vmem:[%s1 + $0x4] sm:$0xf]
        %v1036 = vld [vmem:[%s1 + $0x8] sm:$0xf]
        %v1037 = vld [vmem:[%s1 + $0xc] sm:$0xf]
        %v1038 = vld [vmem:[%s1 + $0x10] sm:$0x3]
        %v1039 = vld [vmem:[%s2] sm:$0x1]
        %v1041 = vlaneseq
        %v1042 = vshrl.u32 %v1041, 7
        %v1043 = vsub.s32 0, %v1042
        %v1044 = vrot.slane %v1039, %v1043
        %v1051 = vunpack.c.l.b16 %v1034
        %v1052 = vunpack.c.l.b16 %v1035
        %v1053 = vunpack.c.l.b16 %v1036
        %v1054 = vunpack.c.l.b16 %v1037
        %v1055 = vunpack.c.l.b16 %v1038
        %v1056 = vpack.c.b16 %v1052, %v1051
        %v1057 = vpack.c.b16 %v1054, %v1053
        %v1058 = vpack.c.b16 %v1055, %v1055
        %vm1061 = vcmask 293888
        %v1063 = vsel %vm1061, %v1026, 0
        %v1066 = vsel %vm1061, %v1027, 0
        %v1069 = vsel %vm1061, %v1028, 0
        %v1072 = vsel %vm1061, %v1029, 0
        %v1075 = vsel %vm1061, %v1030, 0
        %v1078 = vsel %vm1061, %v1031, 0
        %v1081 = vsel %vm1061, %v1032, 0
        %v1084 = vsel %vm1061, %v1033, 0
        %vm1086 = vcmask 1041408
        %v1088 = vsel %vm1086, %v1058, 0
        %1090 = vmatprep.subr.bf16.mxu0 0
        %1091 = vmatpush1.bf16.msra.mxu0 %v1056
        %1092 = vmatprep.subr.bf16.mxu0 0
        %1093 = vmatpush1.bf16.msra.mxu0 %v1057
        %1094 = vmatprep.subr.bf16.mxu0 0
        %1095 = vmatpush1.bf16.msra.mxu0 %v1088
        %1096 = vmatprep.subr.bf16.mxu0 0
        %1097 = vmatpush1.bf16.msra.mxu0 0
        %1098 = vmatprep.subr.bf16.mxu0 0
        %1099 = vmatpush1.bf16.msra.mxu0 0
        %1100 = vmatprep.subr.bf16.mxu0 0
        %1101 = vmatpush1.bf16.msra.mxu0 0
        %1102 = vmatprep.subr.bf16.mxu0 0
        %1103 = vmatpush1.bf16.msra.mxu0 0
        %1104 = vmatprep.subr.bf16.mxu0 0
        %1105 = vmatpush1.bf16.msra.mxu0 0
        %1106 = vmatprep.subr.bf16.mxu0 0
        %1107 = vmatpush1.bf16.msra.mxu0 0
        %1108 = vmatprep.subr.bf16.mxu0 0
        %1109 = vmatpush1.bf16.msra.mxu0 0
        %1110 = vmatprep.subr.bf16.mxu0 0
        %1111 = vmatpush1.bf16.msra.mxu0 0
        %1112 = vmatprep.subr.bf16.mxu0 0
        %1113 = vmatpush1.bf16.msra.mxu0 0
        %1114 = vmatprep.subr.bf16.mxu0 0
        %1115 = vmatpush1.bf16.msra.mxu0 0
        %1116 = vmatprep.subr.bf16.mxu0 0
        %1117 = vmatpush1.bf16.msra.mxu0 0
        %1118 = vmatprep.subr.bf16.mxu0 0
        %1119 = vmatpush1.bf16.msra.mxu0 0
        %1120 = vmatprep.subr.bf16.mxu0 0
        %1121 = vmatpush1.bf16.msra.mxu0 0
        %1122 = vmatprep.mubr.bf16.mxu0 0
        %1123 = vmatmul.mubr.bf16.gmra.mrb[0].mxu0 %v1063
        %v1124 = vpop.f32.mrb[0].mxu0
        %v1125 = vadd.f32 %v1044, %v1124
        %v1126 = vpop.f32.mrb[0].mxu0
        %v1127 = vpop.f32.mrb[0].mxu0
        %v1128 = vadd.f32 %v1044, %v1127
        %v1129 = vpop.f32.mrb[0].mxu0
        %1130 = vmatprep.mubr.bf16.mxu0 0
        %1131 = vmatmul.mubr.bf16.gmra.mrb[0].mxu0 %v1066
        %v1132 = vpop.f32.mrb[0].mxu0
        %v1133 = vadd.f32 %v1044, %v1132
        %v1134 = vpop.f32.mrb[0].mxu0
        %v1135 = vpop.f32.mrb[0].mxu0
        %v1136 = vadd.f32 %v1044, %v1135
        %v1137 = vpop.f32.mrb[0].mxu0
        %1138 = vmatprep.mubr.bf16.mxu0 0
        %1139 = vmatmul.mubr.bf16.gmra.mrb[0].mxu0 %v1069
        %v1140 = vpop.f32.mrb[0].mxu0
        %v1141 = vadd.f32 %v1044, %v1140
        %v1142 = vpop.f32.mrb[0].mxu0
        %v1143 = vpop.f32.mrb[0].mxu0
        %v1144 = vadd.f32 %v1044, %v1143
        %v1145 = vpop.f32.mrb[0].mxu0
        %1146 = vmatprep.mubr.bf16.mxu0 0
        %1147 = vmatmul.mubr.bf16.gmra.mrb[0].mxu0 %v1072
        %v1148 = vpop.f32.mrb[0].mxu0
        %v1149 = vadd.f32 %v1044, %v1148
        %v1150 = vpop.f32.mrb[0].mxu0
        %v1151 = vpop.f32.mrb[0].mxu0
        %v1152 = vadd.f32 %v1044, %v1151
        %v1153 = vpop.f32.mrb[0].mxu0
        %1154 = vmatprep.mubr.bf16.mxu0 0
        %1155 = vmatmul.mubr.bf16.gmra.mrb[0].mxu0 %v1075
        %v1156 = vpop.f32.mrb[0].mxu0
        %v1157 = vadd.f32 %v1044, %v1156
        %v1158 = vpop.f32.mrb[0].mxu0
        %v1159 = vpop.f32.mrb[0].mxu0
        %v1160 = vadd.f32 %v1044, %v1159
        %v1161 = vpop.f32.mrb[0].mxu0
        %1162 = vmatprep.mubr.bf16.mxu0 0
        %1163 = vmatmul.mubr.bf16.gmra.mrb[0].mxu0 %v1078
        %v1164 = vpop.f32.mrb[0].mxu0
        %v1165 = vadd.f32 %v1044, %v1164
        %v1166 = vpop.f32.mrb[0].mxu0
        %v1167 = vpop.f32.mrb[0].mxu0
        %v1168 = vadd.f32 %v1044, %v1167
        %v1169 = vpop.f32.mrb[0].mxu0
        %1170 = vmatprep.mubr.bf16.mxu0 0
        %1171 = vmatmul.mubr.bf16.gmra.mrb[0].mxu0 %v1081
        %v1172 = vpop.f32.mrb[0].mxu0
        %v1173 = vadd.f32 %v1044, %v1172
        %v1174 = vpop.f32.mrb[0].mxu0
        %v1175 = vpop.f32.mrb[0].mxu0
        %v1176 = vadd.f32 %v1044, %v1175
        %v1177 = vpop.f32.mrb[0].mxu0
        %1178 = vmatprep.mubr.bf16.mxu0 0
        %1179 = vmatmul.mubr.bf16.gmra.mrb[0].mxu0 %v1084
        %v1180 = vpop.f32.mrb[0].mxu0
        %v1181 = vadd.f32 %v1044, %v1180
        %v1182 = vpop.f32.mrb[0].mxu0
        %v1183 = vpop.f32.mrb[0].mxu0
        %v1184 = vadd.f32 %v1044, %v1183
        %v1185 = vpop.f32.mrb[0].mxu0
        %1186 = vdwg.mxu0
        %1187 = vst [vmem:[%s187] sm:$0xff] %v1125
        %1188 = vst [vmem:[%s187 + $0x8] sm:$0xff] %v1128
        %1189 = vst [vmem:[%s187 + $0x10] sm:$0xff] %v1133
        %1190 = vst [vmem:[%s187 + $0x18] sm:$0xff] %v1136
        %1191 = vst [vmem:[%s187 + $0x20] sm:$0xff] %v1141
        %1192 = vst [vmem:[%s187 + $0x28] sm:$0xff] %v1144
        %1193 = vst [vmem:[%s187 + $0x30] sm:$0xff] %v1149
        %1194 = vst [vmem:[%s187 + $0x38] sm:$0xff] %v1152
        %1195 = vst [vmem:[%s187 + $0x40] sm:$0xff] %v1157
        %1196 = vst [vmem:[%s187 + $0x48] sm:$0xff] %v1160
        %1197 = vst [vmem:[%s187 + $0x50] sm:$0xff] %v1165
        %1198 = vst [vmem:[%s187 + $0x58] sm:$0xff] %v1168
        %1199 = vst [vmem:[%s187 + $0x60] sm:$0xff] %v1173
        %1200 = vst [vmem:[%s187 + $0x68] sm:$0xff] %v1176
        %1201 = vst [vmem:[%s187 + $0x70] sm:$0xff] %v1181
        %1202 = vst [vmem:[%s187 + $0x78] sm:$0xff] %v1184
        %s1203 = sand.u32 %s109, 1
        %s1204 = scalar_lea.sflag [#allocation4], %s1203
        %s1205 = sand.u32 %s109, 1
        %s1206 = smul.addr %s1205, 128
        %s1207 = scalar_lea.vmem [#allocation3], %s1206
        // Predicated region
        $region33: #{tpu_custom_call.1} parent=31 // pred_check
          %p1208 = pneg %p119
        $region34: #{tpu_custom_call.1} parent=31 // pred_check_branch
          %1210 = sbr.rel (%p1208) target = $region36
        $region35: #{tpu_custom_call.1} parent=31 // pred_region
          %s1211 = smul.u32 8, %s22
          %s1213 = ssub.s32 2048, 2048
          %1214 = vsyncadd %s1204, %s1213
          %s1215 = smul.addr %s1211, 2
          %s1216 = smul.addr %s21, 32
          %s1217 = sadd.s32 %s1215, %s1216
          %s1218 = smul.addr %s1217, 128
          %s1219 = scalar_lea.hbm %s3, %s1218
          %s1220 = sshll.u32 %s1207, 4
          %s1221 = int_to_ptr.vmem [resolvable:$true] %s1220
          %1226 = dma.vmem_to_hbm [thread:$0]  %s1221, 2048, %s1219, %s1204, 128, 128, 8
        $region36: #{tpu_custom_call.1} parent=31 // pred_fallthru
          _
      $region32: #{tpu_custom_call.1} parent=5 // pred_fallthru
        _
      %p1227 = scmp.le.s32.totalorder 2, %s12
      // Predicated region
      $region37: #{tpu_custom_call.1} parent=5 // pred_check
        %p1228 = pneg %p1227
      $region38: #{tpu_custom_call.1} parent=5 // pred_check_branch
        %1230 = sbr.rel (%p1228) target = $region40
      $region39: #{tpu_custom_call.1} parent=5 // pred_region
        %s1231 = ssub.s32 %s12, 2
        // Predicated region
        $region41: #{tpu_custom_call.1} parent=39 // pred_check
          %p1232 = pneg %p125
        $region42: #{tpu_custom_call.1} parent=39 // pred_check_branch
          %1234 = sbr.rel (%p1232) target = $region44
        $region43: #{tpu_custom_call.1} parent=39 // pred_region
          %s1235 = sand.u32 %s110, 1
          %s1236 = scalar_lea.sflag [#allocation4], %s1235
          %s1237 = sand.u32 %s110, 1
          %s1238 = smul.addr %s1237, 128
          %s1239 = scalar_lea.vmem [#allocation3], %s1238
          %1240 = dma.done %s1236, 2048
        $region44: #{tpu_custom_call.1} parent=39 // pred_fallthru
          _
      $region40: #{tpu_custom_call.1} parent=5 // pred_fallthru
        _
    $region6: #{tpu_custom_call.1} parent=1 // loop_footer
      %s16 = sadd.s32 1, %s12
    $region7: #{tpu_custom_call.1} parent=1 // loop_footer_branch
      %11 = sbr.rel target = $region3
    $region8: #{tpu_custom_call.1} parent=1 // loop_exit
      _
    %1241 = vsyncpa [#allocation4], 1
    %s1242 = scalar_lea.sflag [#allocation4], 1
    %1243 = vsyncpa %s1242, 1

</llo_original>
